<compile_context>
chip_gen: v7x
topology: tpu7x:2x2x1
jax: 0.10.0
libtpu: 0.0.40
codegen_flags: <defaults>
</compile_context>

<pallas_src>
import jax
import jax.numpy as jnp
from jax import lax
from jax.experimental import pallas as pl
from jax.experimental.pallas import tpu as pltpu

_OUT_LANES = 128                        # lane-dense partials row: [sum|diff|, sum(mask), 0...]
_VMEM_TILE_BUDGET = 12 * 1024 * 1024    # conservative per-step tile budget (all generations)
_VMEM_LIMIT_BYTES = 32 * 1024 * 1024    # raise v5e's 16 MiB scoped default; safe on v7x (64 MiB/TC)


def _cdiv(a, b):
    return -(-a // b)


def _round_up(a, b):
    return _cdiv(a, b) * b


def _pick_hw_tile(hw, c, kp, feat_itemsize):
    """Largest lane-aligned H*W tile whose one-hot + double-buffered feat fits the budget."""
    # Per H*W column: one-hot (and its int-compare intermediates, counted conservatively
    # as 3x a 4-byte plane) + a double-buffered feat column.
    per_col = 3 * kp * 4 + 2 * c * feat_itemsize
    max_cols = max(_VMEM_TILE_BUDGET // per_col, 128)
    if hw <= max_cols:
        return hw                                   # whole H*W in one step (full-dim block)
    n_tiles = _cdiv(hw, (max_cols // 128) * 128)
    return _round_up(_cdiv(hw, n_tiles), 128)       # balanced tiles, multiple of 128


def _make_kernel(hw, needs_tail_mask):
    def kernel(ind_ref, feat_ref, mask_ref, target_ref, out_ref, pred_acc):
        # ind_ref:    (1, Kp)  int32   gather indices into H*W (padded with -1)
        # feat_ref:   (C, thw)         one H*W tile of output[b], native NCHW layout
        # mask_ref:   (C, Kp)  f32     mask^T  (padded with 0)
        # target_ref: (C, Kp)  f32     target^T (padded with 0)
        # out_ref:    (1, 128) f32     per-batch [sum|diff|, sum(mask), 0, ...]
        # pred_acc:   (C, Kp)  f32     gathered pred^T, accumulated over H*W tiles
        t = pl.program_id(1)
        thw = feat_ref.shape[1]
        kp = ind_ref.shape[1]

        @pl.when(t == 0)
        def _():
            pred_acc[...] = jnp.zeros_like(pred_acc)

        feat = feat_ref[...]
        if needs_tail_mask:
            # cdiv grid: the last tile may contain out-of-range (garbage / possibly NaN)
            # columns.  Zero them explicitly — relying on the one-hot being zero there is
            # not NaN-safe inside the matmul accumulation.
            col = lax.broadcasted_iota(jnp.int32, feat.shape, 1)
            feat = jnp.where(col < hw - t * thw, feat, 0)

        # Local one-hot: onehot[n, j] = (n == ind[j] - t*thw).  The tile offset is applied
        # to the (1, Kp) indices (K ops), not the (thw, Kp) iota (thw*K ops).  Padded (-1)
        # or out-of-tile indices match nothing -> zero column -> pred contribution 0.
        local_ind = ind_ref[...] - t * thw
        pos = lax.broadcasted_iota(jnp.int32, (thw, kp), 0)
        onehot = (pos == local_ind).astype(feat.dtype)
        pred_acc[...] += jnp.dot(feat, onehot, preferred_element_type=jnp.float32)

        # Final H*W tile: masked-L1 reduction, single lane-dense vector store of partials.
        @pl.when(t == pl.num_programs(1) - 1)
        def _():
            m = mask_ref[...]
            diff = jnp.abs(pred_acc[...] * m - target_ref[...] * m)
            lane = lax.broadcasted_iota(jnp.int32, (1, _OUT_LANES), 1)
            row = jnp.where(lane == 0, jnp.sum(diff), 0.0)
            row = jnp.where(lane == 1, jnp.sum(m), row)
            out_ref[...] = row

    return kernel


def reg_weighted_l1_loss(output, mask, ind, target):
    B, C, H, W = output.shape
    K = ind.shape[1]
    HW = H * W

    # Free view: NCHW with spatial dims flattened.  No transpose of the big tensor.
    feat = output.reshape(B, C, HW)

    # Lane-pad K to a multiple of 128: ind padded with -1 (gathers nothing),
    # mask/target padded with 0 (contribute nothing to either sum).
    Kp = _round_up(max(K, 1), 128)
    ind_p = jnp.full((B, 1, Kp), -1, dtype=jnp.int32)
    ind_p = ind_p.at[:, 0, :K].set(ind.astype(jnp.int32))
    mask_t = jnp.zeros((B, C, Kp), jnp.float32)
    mask_t = mask_t.at[:, :, :K].set(jnp.transpose(mask.astype(jnp.float32), (0, 2, 1)))
    target_t = jnp.zeros((B, C, Kp), jnp.float32)
    target_t = target_t.at[:, :, :K].set(jnp.transpose(target.astype(jnp.float32), (0, 2, 1)))

    thw = _pick_hw_tile(HW, C, Kp, feat.dtype.itemsize)
    n_hw = _cdiv(HW, thw)
    needs_tail_mask = (HW % thw) != 0

    partials = pl.pallas_call(
        _make_kernel(HW, needs_tail_mask),
        grid=(B, n_hw),
        in_specs=[
            pl.BlockSpec((None, 1, Kp), lambda b, t: (b, 0, 0)),     # ind
            pl.BlockSpec((None, C, thw), lambda b, t: (b, 0, t)),    # feat (C, H*W) tile
            pl.BlockSpec((None, C, Kp), lambda b, t: (b, 0, 0)),     # mask^T
            pl.BlockSpec((None, C, Kp), lambda b, t: (b, 0, 0)),     # target^T
        ],
        out_specs=pl.BlockSpec((None, 1, _OUT_LANES), lambda b, t: (b, 0, 0)),
        out_shape=jax.ShapeDtypeStruct((B, 1, _OUT_LANES), jnp.float32),
        scratch_shapes=[pltpu.VMEM((C, Kp), jnp.float32)],
        compiler_params=pltpu.CompilerParams(
            dimension_semantics=("parallel", "arbitrary"),
            vmem_limit_bytes=_VMEM_LIMIT_BYTES),
    )(ind_p, feat, mask_t, target_t)

    loss_sum = jnp.sum(partials[:, 0, 0])
    mask_sum = jnp.sum(partials[:, 0, 1])
    return loss_sum / (mask_sum + jnp.float32(1e-4))


def _reference(output, mask, ind, target):
    B, C, H, W = output.shape
    feat = jnp.transpose(output, (0, 2, 3, 1)).reshape(B, H * W, C)
    pred = jax.vmap(lambda f, i: f[i])(feat, ind)          # (B, K, C)
    mask = mask.astype(jnp.float32)
    diff = jnp.abs(pred * mask - target * mask)
    return jnp.sum(diff) / (jnp.sum(mask) + 1e-4)


if __name__ == "__main__":
    B, C, H, W, K = 2, 4, 16, 16, 8

    key = jax.random.PRNGKey(0)
    k1, k2, k3, k4 = jax.random.split(key, 4)
    output = jax.random.normal(k1, (B, C, H, W), dtype=jnp.float32)
    target = jax.random.normal(k2, (B, K, C), dtype=jnp.float32)
    ind = jax.random.randint(k3, (B, K), 0, H * W, dtype=jnp.int32)
    mask = (jax.random.uniform(k4, (B, K, C)) > 0.3).astype(jnp.float32)

    loss = jax.block_until_ready(reg_weighted_l1_loss(output, mask, ind, target))
    ref = _reference(output, mask, ind, target)
    assert jnp.allclose(loss, ref, rtol=1e-5, atol=1e-5), (loss, ref)

    print("KERNEL_OK")
</pallas_src>

<mosaic_0001>
module attributes {stable_mosaic.version = 11 : i64} {
  func.func @kernel(%arg0: i32, %arg1: i32, %arg2: memref<1x1x128xi32, #tpu.memory_space<vmem>>, %arg3: memref<1x4x256xf32, #tpu.memory_space<vmem>>, %arg4: memref<1x4x128xf32, #tpu.memory_space<vmem>>, %arg5: memref<1x4x128xf32, #tpu.memory_space<vmem>>, %arg6: memref<1x1x128xf32, #tpu.memory_space<vmem>>, %arg7: memref<4x128xf32, #tpu.memory_space<vmem>>) attributes {dimension_semantics = [#tpu.dimension_semantics<parallel>, #tpu.dimension_semantics<arbitrary>], iteration_bounds = array<i64: 2, 1>, scalar_prefetch = 0 : i64, scratch_operands = 1 : i64, tpu.core_type = #tpu.core_type<tc>, window_params = [{transform_indices = @transform_0, window_bounds = array<i64: 1, 1, 128>}, {transform_indices = @transform_1, window_bounds = array<i64: 1, 4, 256>}, {transform_indices = @transform_2, window_bounds = array<i64: 1, 4, 128>}, {transform_indices = @transform_3, window_bounds = array<i64: 1, 4, 128>}, {transform_indices = @transform_4, window_bounds = array<i64: 1, 1, 128>}]} {
    %c0_i32 = arith.constant 0 : i32
    %0 = arith.cmpi eq, %arg1, %c0_i32 : i32
    %1 = arith.extui %0 : i1 to i32
    %c0_i32_0 = arith.constant 0 : i32
    %2 = arith.cmpi ne, %1, %c0_i32_0 : i32
    scf.if %2 {
      %cst_12 = arith.constant 0.000000e+00 : f32
      %22 = vector.broadcast %cst_12 : f32 to vector<4x128xf32>
      %c0_13 = arith.constant 0 : index
      %c0_14 = arith.constant 0 : index
      %23 = vector.load %arg7[%c0_13, %c0_14] : memref<4x128xf32, #tpu.memory_space<vmem>>, vector<4x128xf32>
      tpu.vector_store %arg7[%c0_13, %c0_14], %22 {strides = array<i32>} : memref<4x128xf32, #tpu.memory_space<vmem>>, vector<4x128xf32>,
    } else {
    }
    %c0 = arith.constant 0 : index
    %c0_1 = arith.constant 0 : index
    %c0_2 = arith.constant 0 : index
    %3 = vector.load %arg3[%c0, %c0_1, %c0_2] : memref<1x4x256xf32, #tpu.memory_space<vmem>>, vector<1x4x256xf32>
    %4 = vector.shape_cast %3 : vector<1x4x256xf32> to vector<4x256xf32>
    %c0_3 = arith.constant 0 : index
    %c0_4 = arith.constant 0 : index
    %c0_5 = arith.constant 0 : index
    %5 = vector.load %arg2[%c0_3, %c0_4, %c0_5] : memref<1x1x128xi32, #tpu.memory_space<vmem>>, vector<1x1x128xi32>
    %6 = vector.shape_cast %5 : vector<1x1x128xi32> to vector<1x128xi32>
    %c256_i32 = arith.constant 256 : i32
    %7 = arith.muli %arg1, %c256_i32 : i32
    %8 = vector.broadcast %7 : i32 to vector<1x128xi32>
    %9 = arith.subi %6, %8 : vector<1x128xi32>
    %10 = tpu.iota {dimensions = array<i32: 0>} : vector<256x128xi32>
    %11 = vector.broadcast %9 : vector<1x128xi32> to vector<256x128xi32>
    %12 = arith.cmpi eq, %10, %11 : vector<256x128xi32>
    %13 = arith.extui %12 : vector<256x128xi1> to vector<256x128xi32>
    %14 = arith.sitofp %13 : vector<256x128xi32> to vector<256x128xf32>
    %c0_6 = arith.constant 0 : index
    %c0_7 = arith.constant 0 : index
    %15 = vector.load %arg7[%c0_6, %c0_7] : memref<4x128xf32, #tpu.memory_space<vmem>>, vector<4x128xf32>
    %cst = arith.constant dense<0.000000e+00> : vector<4x128xf32>
    %16 = tpu.matmul %4, %14, %cst {dimension_numbers = #tpu.dot_dimension_numbers<[1], [0], [0], [1], [0, 0, 1, 1], [], []>} : vector<4x256xf32>, vector<256x128xf32>, vector<4x128xf32> -> vector<4x128xf32>
    %17 = arith.addf %15, %16 : vector<4x128xf32>
    %c0_8 = arith.constant 0 : index
    %c0_9 = arith.constant 0 : index
    %18 = vector.load %arg7[%c0_8, %c0_9] : memref<4x128xf32, #tpu.memory_space<vmem>>, vector<4x128xf32>
    tpu.vector_store %arg7[%c0_8, %c0_9], %17 {strides = array<i32>} : memref<4x128xf32, #tpu.memory_space<vmem>>, vector<4x128xf32>,
    %c0_i32_10 = arith.constant 0 : i32
    %19 = arith.cmpi eq, %arg1, %c0_i32_10 : i32
    %20 = arith.extui %19 : i1 to i32
    %c0_i32_11 = arith.constant 0 : i32
    %21 = arith.cmpi ne, %20, %c0_i32_11 : i32
    scf.if %21 {
      %c0_12 = arith.constant 0 : index
      %c0_13 = arith.constant 0 : index
      %c0_14 = arith.constant 0 : index
      %22 = vector.load %arg4[%c0_12, %c0_13, %c0_14] : memref<1x4x128xf32, #tpu.memory_space<vmem>>, vector<1x4x128xf32>
      %23 = vector.shape_cast %22 : vector<1x4x128xf32> to vector<4x128xf32>
      %c0_15 = arith.constant 0 : index
      %c0_16 = arith.constant 0 : index
      %24 = vector.load %arg7[%c0_15, %c0_16] : memref<4x128xf32, #tpu.memory_space<vmem>>, vector<4x128xf32>
      %25 = arith.mulf %24, %23 : vector<4x128xf32>
      %c0_17 = arith.constant 0 : index
      %c0_18 = arith.constant 0 : index
      %c0_19 = arith.constant 0 : index
      %26 = vector.load %arg5[%c0_17, %c0_18, %c0_19] : memref<1x4x128xf32, #tpu.memory_space<vmem>>, vector<1x4x128xf32>
      %27 = vector.shape_cast %26 : vector<1x4x128xf32> to vector<4x128xf32>
      %28 = arith.mulf %27, %23 : vector<4x128xf32>
      %29 = arith.subf %25, %28 : vector<4x128xf32>
      %30 = math.absf %29 : vector<4x128xf32>
      %31 = tpu.iota {dimensions = array<i32: 1>} : vector<1x128xi32>
      %c0_i32_20 = arith.constant 0 : i32
      %32 = vector.broadcast %c0_i32_20 : i32 to vector<1x128xi32>
      %33 = arith.cmpi eq, %31, %32 : vector<1x128xi32>
      %34 = vector.shape_cast %30 : vector<4x128xf32> to vector<1x4x128xf32>
      %cst_21 = arith.constant dense<0.000000e+00> : vector<1xf32>
      %35 = vector.multi_reduction <add>, %34, %cst_21 [1, 2] : vector<1x4x128xf32> to vector<1xf32>
      %36 = vector.shape_cast %35 : vector<1xf32> to vector<1x1x1xf32>
      %37 = vector.extract %36[0, 0, 0] : f32 from vector<1x1x1xf32>
      %cst_22 = arith.constant 0.000000e+00 : f32
      %38 = vector.broadcast %37 : f32 to vector<1x128xf32>
      %39 = vector.broadcast %cst_22 : f32 to vector<1x128xf32>
      %40 = arith.select %33, %38, %39 : vector<1x128xi1>, vector<1x128xf32>
      %c1_i32 = arith.constant 1 : i32
      %41 = vector.broadcast %c1_i32 : i32 to vector<1x128xi32>
      %42 = arith.cmpi eq, %31, %41 : vector<1x128xi32>
      %43 = vector.shape_cast %23 : vector<4x128xf32> to vector<1x4x128xf32>
      %cst_23 = arith.constant dense<0.000000e+00> : vector<1xf32>
      %44 = vector.multi_reduction <add>, %43, %cst_23 [1, 2] : vector<1x4x128xf32> to vector<1xf32>
      %45 = vector.shape_cast %44 : vector<1xf32> to vector<1x1x1xf32>
      %46 = vector.extract %45[0, 0, 0] : f32 from vector<1x1x1xf32>
      %47 = vector.broadcast %46 : f32 to vector<1x128xf32>
      %48 = arith.select %42, %47, %40 : vector<1x128xi1>, vector<1x128xf32>
      %c0_24 = arith.constant 0 : index
      %c0_25 = arith.constant 0 : index
      %c0_26 = arith.constant 0 : index
      %49 = vector.load %arg6[%c0_24, %c0_25, %c0_26] : memref<1x1x128xf32, #tpu.memory_space<vmem>>, vector<1x1x128xf32>
      %50 = vector.shape_cast %49 : vector<1x1x128xf32> to vector<1x128xf32>
      %51 = vector.shape_cast %48 : vector<1x128xf32> to vector<1x1x128xf32>
      tpu.vector_store %arg6[%c0_24, %c0_25, %c0_26], %51 {strides = array<i32>} : memref<1x1x128xf32, #tpu.memory_space<vmem>>, vector<1x1x128xf32>,
    } else {
    }
    return
  }
  func.func @transform_0(%arg0: i32, %arg1: i32) -> (i32, i32, i32) {
    %c0_i32 = arith.constant 0 : i32
    %c0_i32_0 = arith.constant 0 : i32
    %c0_i32_1 = arith.constant 0 : i32
    return %arg0, %c0_i32, %c0_i32_0 : i32, i32, i32
  }
  func.func @transform_1(%arg0: i32, %arg1: i32) -> (i32, i32, i32) {
    %c0_i32 = arith.constant 0 : i32
    %c0_i32_0 = arith.constant 0 : i32
    return %arg0, %c0_i32, %arg1 : i32, i32, i32
  }
  func.func @transform_2(%arg0: i32, %arg1: i32) -> (i32, i32, i32) {
    %c0_i32 = arith.constant 0 : i32
    %c0_i32_0 = arith.constant 0 : i32
    %c0_i32_1 = arith.constant 0 : i32
    return %arg0, %c0_i32, %c0_i32_0 : i32, i32, i32
  }
  func.func @transform_3(%arg0: i32, %arg1: i32) -> (i32, i32, i32) {
    %c0_i32 = arith.constant 0 : i32
    %c0_i32_0 = arith.constant 0 : i32
    %c0_i32_1 = arith.constant 0 : i32
    return %arg0, %c0_i32, %c0_i32_0 : i32, i32, i32
  }
  func.func @transform_4(%arg0: i32, %arg1: i32) -> (i32, i32, i32) {
    %c0_i32 = arith.constant 0 : i32
    %c0_i32_0 = arith.constant 0 : i32
    %c0_i32_1 = arith.constant 0 : i32
    return %arg0, %c0_i32, %c0_i32_0 : i32, i32, i32
  }
}

</mosaic_0001>

<llo_original>
// kernel: tpu_custom_call.1
$region0: #{tpu_custom_call.1}
  #allocation0 [shape = 'u32[]', space=smem, size = 0x4, offset = 0x4, fixed_abs, tag = 'smem constant byte address 0x4 - core index']
  #allocation1 [shape = 'u32[144,128]{1,0:T(1,128)}', space=vmem, size = 0x12000, scoped, tag = 'internal scratch']
  #allocation2 [shape = 'f32[4,128]{1,0:T(4,128)}', space=vmem, size = 0x800, scoped, tag = 'scratch operand']
  %s0 = inlined_call_operand.hbm [shape: s32[2,1,128], index: 0, kind: input, shape index: {}]
  %s1 = inlined_call_operand.hbm [shape: f32[2,4,256], index: 1, kind: input, shape index: {}]
  %s2 = inlined_call_operand.hbm [shape: f32[2,4,128], index: 2, kind: input, shape index: {}]
  %s3 = inlined_call_operand.vmem [shape: f32[2,4,128], index: 3, kind: input, shape index: {}]
  %s4 = inlined_call_operand.hbm [shape: f32[2,1,128], index: 4, kind: output, shape index: {}]
  %s5 = sld [smem:[#allocation0]]
  $region69: #{tpu_custom_call.1} parent=0
    _
  %s7 = ssub.s32 1, %s5
  %s8 = scalar_select 0, %s7, %s5
  $region1: #{tpu_custom_call.1} parent=0
    #allocation3 [shape = 'u8[1024]{0}', space=vmem, size = 0x400, scoped, tag = 'input window, operand 0']
    #allocation4 [shape = 's32[2]{0}', space=sflag, size = 0x8, scoped, tag = 'scoped memory for tpu_custom_call.1']
    #allocation5 [shape = 's32[2]{0}', space=sflag, size = 0x8, scoped, tag = 'scoped memory for tpu_custom_call.1']
    #allocation6 [shape = 'u8[8192]{0}', space=vmem, size = 0x2000, scoped, tag = 'input window, operand 1']
    #allocation7 [shape = 's32[2]{0}', space=sflag, size = 0x8, scoped, tag = 'scoped memory for tpu_custom_call.1']
    #allocation8 [shape = 'u8[4096]{0}', space=vmem, size = 0x1000, scoped, tag = 'input window, operand 2']
    #allocation9 [shape = 'u8[1024]{0}', space=vmem, size = 0x400, scoped, tag = 'output window, operand 0']
    %9 = vsyncpa [#allocation4], 0
    %s10 = scalar_lea.sflag [#allocation4], 1
    %11 = vsyncpa %s10, 0
    %12 = vsyncpa [#allocation7], 0
    %s13 = scalar_lea.sflag [#allocation7], 1
    %14 = vsyncpa %s13, 0
    %15 = vsyncpa [#allocation5], 0
    %s16 = scalar_lea.sflag [#allocation5], 1
    %17 = vsyncpa %s16, 0
    loop: start=0, step=1, limit=4
    $region2: #{tpu_custom_call.1} parent=1 // loop_pre_header
      _
    $region3: #{tpu_custom_call.1} parent=1 // loop_header
      %s19 = sphi 0, %s23
      %p20 = scmp.ge.s32.totalorder %s19, 4
      %s26 = sphi 0, %s38
      %s27 = sphi 0, %s34
      %s28 = sphi 0, %s26
      %s29 = sphi 0, %s27
      %s30 = sphi 0, %s28
      %s31 = sphi 0, %s29
      %s41 = sphi 0, %s43
      %s44 = sphi 0, %s41
      %s45 = sphi 0, %s44
      %s61 = sphi 0, %s45
      %s69 = sphi 0, %s71
      %s72 = sphi 0, %s69
      %s73 = sphi 0, %s72
      %s89 = sphi 0, %s73
      %s95 = sphi 0, %s97
      %s98 = sphi 0, %s95
      %s99 = sphi 0, %s98
      %s115 = sphi 0, %s99
      %s121 = sphi 0, %s123
      %s124 = sphi 0, %s121
      %s125 = sphi 0, %s124
      %s141 = sphi 0, %s125
      %s147 = sphi 0, %s149
      %s150 = sphi 0, %s147
      %s151 = sphi 0, %s150
      %s167 = sphi 0, %s151
    $region4: #{tpu_custom_call.1} parent=1 // loop_header_branch
      %22 = sbr.rel (%p20) target = $region8
    $region5: #{tpu_custom_call.1} parent=1 // loop_body
      %s24 = ssub.s32 %s19, 1
      %s25 = ssub.s32 %s19, 2
      %s32 = sadd.s32 1, %s27
      %p33 = scmp.ge.s32.totalorder %s32, 1
      %s34 = scalar_select %p33, 0, %s32
      %s35 = sadd.s32 1, %s26
      %s36 = scalar_select %p33, %s35, %s26
      %p37 = scmp.ge.s32.totalorder %s36, 2
      %s38 = scalar_select %p37, 0, %s36
      %s39 = ssub.s32 %s26, %s38
      %p40 = scmp.eq.s32.totalorder %s39, 0
      %s42 = sadd.s32 %s41, 1
      %s43 = scalar_select %p40, %s41, %s42
      %p46 = pneg %p40
      %p47 = scmp.eq.s32.totalorder %s19, 1
      %p48 = por %p46, %p47
      %p49 = scmp.ne.s32.totalorder %s41, %s44
      %p50 = scmp.eq.s32.totalorder %s19, 0
      %p51 = por %p49, %p50
      %p52 = scmp.ne.s32.totalorder %s41, %s44
      %p53 = scmp.eq.s32.totalorder %s24, 1
      %p54 = por %p52, %p53
      %p55 = scmp.ne.s32.totalorder %s44, %s45
      %p56 = scmp.eq.s32.totalorder %s24, 0
      %p57 = por %p55, %p56
      %p58 = scmp.ne.s32.totalorder %s44, %s45
      %p59 = scmp.eq.s32.totalorder %s25, 1
      %p60 = por %p58, %p59
      %p62 = scmp.ne.s32.totalorder %s45, %s61
      %p63 = scmp.eq.s32.totalorder %s25, 0
      %p64 = por %p62, %p63
      %s65 = ssub.s32 %s26, %s38
      %s66 = ssub.s32 %s27, %s34
      %s67 = sor.u32 %s65, %s66
      %p68 = scmp.eq.s32.totalorder %s67, 0
      %s70 = sadd.s32 %s69, 1
      %s71 = scalar_select %p68, %s69, %s70
      %p74 = pneg %p68
      %p75 = scmp.eq.s32.totalorder %s19, 1
      %p76 = por %p74, %p75
      %p77 = scmp.ne.s32.totalorder %s69, %s72
      %p78 = scmp.eq.s32.totalorder %s19, 0
      %p79 = por %p77, %p78
      %p80 = scmp.ne.s32.totalorder %s69, %s72
      %p81 = scmp.eq.s32.totalorder %s24, 1
      %p82 = por %p80, %p81
      %p83 = scmp.ne.s32.totalorder %s72, %s73
      %p84 = scmp.eq.s32.totalorder %s24, 0
      %p85 = por %p83, %p84
      %p86 = scmp.ne.s32.totalorder %s72, %s73
      %p87 = scmp.eq.s32.totalorder %s25, 1
      %p88 = por %p86, %p87
      %p90 = scmp.ne.s32.totalorder %s73, %s89
      %p91 = scmp.eq.s32.totalorder %s25, 0
      %p92 = por %p90, %p91
      %s93 = ssub.s32 %s26, %s38
      %p94 = scmp.eq.s32.totalorder %s93, 0
      %s96 = sadd.s32 %s95, 1
      %s97 = scalar_select %p94, %s95, %s96
      %p100 = pneg %p94
      %p101 = scmp.eq.s32.totalorder %s19, 1
      %p102 = por %p100, %p101
      %p103 = scmp.ne.s32.totalorder %s95, %s98
      %p104 = scmp.eq.s32.totalorder %s19, 0
      %p105 = por %p103, %p104
      %p106 = scmp.ne.s32.totalorder %s95, %s98
      %p107 = scmp.eq.s32.totalorder %s24, 1
      %p108 = por %p106, %p107
      %p109 = scmp.ne.s32.totalorder %s98, %s99
      %p110 = scmp.eq.s32.totalorder %s24, 0
      %p111 = por %p109, %p110
      %p112 = scmp.ne.s32.totalorder %s98, %s99
      %p113 = scmp.eq.s32.totalorder %s25, 1
      %p114 = por %p112, %p113
      %p116 = scmp.ne.s32.totalorder %s99, %s115
      %p117 = scmp.eq.s32.totalorder %s25, 0
      %p118 = por %p116, %p117
      %s119 = ssub.s32 %s26, %s38
      %p120 = scmp.eq.s32.totalorder %s119, 0
      %s122 = sadd.s32 %s121, 1
      %s123 = scalar_select %p120, %s121, %s122
      %p126 = pneg %p120
      %p127 = scmp.eq.s32.totalorder %s19, 1
      %p128 = por %p126, %p127
      %p129 = scmp.ne.s32.totalorder %s121, %s124
      %p130 = scmp.eq.s32.totalorder %s19, 0
      %p131 = por %p129, %p130
      %p132 = scmp.ne.s32.totalorder %s121, %s124
      %p133 = scmp.eq.s32.totalorder %s24, 1
      %p134 = por %p132, %p133
      %p135 = scmp.ne.s32.totalorder %s124, %s125
      %p136 = scmp.eq.s32.totalorder %s24, 0
      %p137 = por %p135, %p136
      %p138 = scmp.ne.s32.totalorder %s124, %s125
      %p139 = scmp.eq.s32.totalorder %s25, 1
      %p140 = por %p138, %p139
      %p142 = scmp.ne.s32.totalorder %s125, %s141
      %p143 = scmp.eq.s32.totalorder %s25, 0
      %p144 = por %p142, %p143
      %s145 = ssub.s32 %s26, %s38
      %p146 = scmp.eq.s32.totalorder %s145, 0
      %s148 = sadd.s32 %s147, 1
      %s149 = scalar_select %p146, %s147, %s148
      %p152 = pneg %p146
      %p153 = scmp.eq.s32.totalorder %s19, 1
      %p154 = por %p152, %p153
      %p155 = scmp.ne.s32.totalorder %s147, %s150
      %p156 = scmp.eq.s32.totalorder %s19, 0
      %p157 = por %p155, %p156
      %p158 = scmp.ne.s32.totalorder %s147, %s150
      %p159 = scmp.eq.s32.totalorder %s24, 1
      %p160 = por %p158, %p159
      %p161 = scmp.ne.s32.totalorder %s150, %s151
      %p162 = scmp.eq.s32.totalorder %s24, 0
      %p163 = por %p161, %p162
      %p164 = scmp.ne.s32.totalorder %s150, %s151
      %p165 = scmp.eq.s32.totalorder %s25, 1
      %p166 = por %p164, %p165
      %p168 = scmp.ne.s32.totalorder %s151, %s167
      %p169 = scmp.eq.s32.totalorder %s25, 0
      %p170 = por %p168, %p169
      %p171 = scmp.le.s32.totalorder 1, %s19
      %p172 = scmp.lt.s32.totalorder %s19, 3
      %p173 = pnand %p171, %p172
      %p174 = pneg %p173
      // Predicated region
      $region9: #{tpu_custom_call.1} parent=5 // pred_check
        _
      $region10: #{tpu_custom_call.1} parent=5 // pred_check_branch
        %176 = sbr.rel (%p173) target = $region12
      $region11: #{tpu_custom_call.1} parent=5 // pred_region
        %s177 = ssub.s32 %s19, 1
      $region12: #{tpu_custom_call.1} parent=5 // pred_fallthru
        _
      %p178 = scmp.lt.s32.totalorder %s19, 2
      // Predicated region
      $region13: #{tpu_custom_call.1} parent=5 // pred_check
        %p179 = pneg %p178
      $region14: #{tpu_custom_call.1} parent=5 // pred_check_branch
        %181 = sbr.rel (%p179) target = $region16
      $region15: #{tpu_custom_call.1} parent=5 // pred_region
        // Predicated region
        $region17: #{tpu_custom_call.1} parent=15 // pred_check
          %p182 = pneg %p51
        $region18: #{tpu_custom_call.1} parent=15 // pred_check_branch
          %184 = sbr.rel (%p182) target = $region20
        $region19: #{tpu_custom_call.1} parent=15 // pred_region
          %s185 = sand.u32 %s41, 1
          %s186 = scalar_lea.sflag [#allocation4], %s185
          %s187 = sand.u32 %s41, 1
          %s188 = scalar_lea.vmem [#allocation3], %s187
          %s190 = ssub.s32 16, 16
          %191 = vsyncadd %s186, %s190
          %s192 = smul.addr %s26, 16
          %s193 = scalar_lea.hbm %s0, %s192
          %s195 = sshll.u32 %s188, 4
          %s196 = int_to_ptr.vmem [resolvable:$true] %s195
          %198 = dma.hbm_to_vmem [thread:$0]  %s193, 16, %s196, %s186
        $region20: #{tpu_custom_call.1} parent=15 // pred_fallthru
          _
        // Predicated region
        $region21: #{tpu_custom_call.1} parent=15 // pred_check
          %p199 = pneg %p79
        $region22: #{tpu_custom_call.1} parent=15 // pred_check_branch
          %201 = sbr.rel (%p199) target = $region24
        $region23: #{tpu_custom_call.1} parent=15 // pred_region
          %s202 = sand.u32 %s19, 1
          %s203 = scalar_lea.sflag [#allocation7], %s202
          %s204 = sand.u32 %s69, 1
          %s205 = smul.addr %s204, 8
          %s206 = scalar_lea.vmem [#allocation6], %s205
          %s207 = smul.u32 2, %s27
          %s209 = ssub.s32 128, 128
          %210 = vsyncadd %s203, %s209
          %s211 = smul.addr %s26, 2
          %s212 = sadd.s32 %s207, %s211
          %s213 = smul.addr %s212, 64
          %s214 = scalar_lea.hbm %s1, %s213
          %s216 = sshll.u32 %s206, 4
          %s217 = int_to_ptr.vmem [resolvable:$true] %s216
          %219 = dma.hbm_to_vmem [thread:$0]  %s214, 128, %s217, %s203
        $region24: #{tpu_custom_call.1} parent=15 // pred_fallthru
          _
        // Predicated region
        $region25: #{tpu_custom_call.1} parent=15 // pred_check
          %p220 = pneg %p105
        $region26: #{tpu_custom_call.1} parent=15 // pred_check_branch
          %222 = sbr.rel (%p220) target = $region28
        $region27: #{tpu_custom_call.1} parent=15 // pred_region
          %s223 = sand.u32 %s19, 1
          %s224 = scalar_lea.sflag [#allocation7], %s223
          %s225 = sand.u32 %s95, 1
          %s226 = smul.addr %s225, 4
          %s227 = scalar_lea.vmem [#allocation8], %s226
          %s229 = ssub.s32 64, 64
          %230 = vsyncadd %s224, %s229
          %s231 = smul.addr %s26, 64
          %s232 = scalar_lea.hbm %s2, %s231
          %s234 = sshll.u32 %s227, 4
          %s235 = int_to_ptr.vmem [resolvable:$true] %s234
          %237 = dma.hbm_to_vmem [thread:$0]  %s232, 64, %s235, %s224
        $region28: #{tpu_custom_call.1} parent=15 // pred_fallthru
          _
        // Predicated region
        $region29: #{tpu_custom_call.1} parent=15 // pred_check
          %p238 = pneg %p131
        $region30: #{tpu_custom_call.1} parent=15 // pred_check_branch
          %240 = sbr.rel (%p238) target = $region32
        $region31: #{tpu_custom_call.1} parent=15 // pred_region
          %p241 = scmp.lt.s32.totalorder %s26, 1
          %s242 = scalar_select %p241, %s26, 1
          %s243 = smul.addr %s242, 4
          %s244 = scalar_lea.vmem %s3, %s243
        $region32: #{tpu_custom_call.1} parent=15 // pred_fallthru
          _
      $region16: #{tpu_custom_call.1} parent=5 // pred_fallthru
        _
      %p245 = scmp.le.s32.totalorder 1, %s19
      %p246 = scmp.lt.s32.totalorder %s19, 3
      %p247 = pnand %p245, %p246
      %p248 = pneg %p247
      // Predicated region
      $region33: #{tpu_custom_call.1} parent=5 // pred_check
        _
      $region34: #{tpu_custom_call.1} parent=5 // pred_check_branch
        %250 = sbr.rel (%p247) target = $region36
      $region35: #{tpu_custom_call.1} parent=5 // pred_region
        %s251 = ssub.s32 %s19, 1
        %s252 = sand.u32 %s44, 1
        %s253 = scalar_lea.sflag [#allocation4], %s252
        %s254 = sand.u32 %s44, 1
        %s255 = scalar_lea.vmem [#allocation3], %s254
        // Predicated region
        $region37: #{tpu_custom_call.1} parent=35 // pred_check
          %p256 = pneg %p57
        $region38: #{tpu_custom_call.1} parent=35 // pred_check_branch
          %258 = sbr.rel (%p256) target = $region40
        $region39: #{tpu_custom_call.1} parent=35 // pred_region
          %259 = dma.done %s253, 16
        $region40: #{tpu_custom_call.1} parent=35 // pred_fallthru
          _
        %s260 = sand.u32 %s24, 1
        %s261 = scalar_lea.sflag [#allocation7], %s260
        %s262 = sand.u32 %s72, 1
        %s263 = smul.addr %s262, 8
        %s264 = scalar_lea.vmem [#allocation6], %s263
        // Predicated region
        $region41: #{tpu_custom_call.1} parent=35 // pred_check
          %p265 = pneg %p85
        $region42: #{tpu_custom_call.1} parent=35 // pred_check_branch
          %267 = sbr.rel (%p265) target = $region44
        $region43: #{tpu_custom_call.1} parent=35 // pred_region
          %268 = dma.done %s261, 128
        $region44: #{tpu_custom_call.1} parent=35 // pred_fallthru
          _
        %s269 = sand.u32 %s24, 1
        %s270 = scalar_lea.sflag [#allocation7], %s269
        %s271 = sand.u32 %s98, 1
        %s272 = smul.addr %s271, 4
        %s273 = scalar_lea.vmem [#allocation8], %s272
        // Predicated region
        $region45: #{tpu_custom_call.1} parent=35 // pred_check
          %p274 = pneg %p111
        $region46: #{tpu_custom_call.1} parent=35 // pred_check_branch
          %276 = sbr.rel (%p274) target = $region48
        $region47: #{tpu_custom_call.1} parent=35 // pred_region
          %277 = dma.done %s270, 64
        $region48: #{tpu_custom_call.1} parent=35 // pred_fallthru
          _
        %s278 = sand.u32 %s44, 1
        %s279 = scalar_lea.sflag [#allocation4], %s278
        %s280 = sand.u32 %s44, 1
        %s281 = scalar_lea.vmem [#allocation3], %s280
        %p282 = pneg %p57
        %p283 = pneg %p54
        %s284 = sand.u32 %s24, 1
        %s285 = scalar_lea.sflag [#allocation7], %s284
        %s286 = sand.u32 %s72, 1
        %s287 = smul.addr %s286, 8
        %s288 = scalar_lea.vmem [#allocation6], %s287
        %p289 = pneg %p85
        %p290 = pneg %p82
        %s291 = sand.u32 %s24, 1
        %s292 = scalar_lea.sflag [#allocation7], %s291
        %s293 = sand.u32 %s98, 1
        %s294 = smul.addr %s293, 4
        %s295 = scalar_lea.vmem [#allocation8], %s294
        %p296 = pneg %p111
        %p297 = pneg %p108
        %p298 = scmp.lt.s32.totalorder %s28, 1
        %s299 = scalar_select %p298, %s28, 1
        %s300 = smul.addr %s299, 4
        %s301 = scalar_lea.vmem %s3, %s300
        %p302 = pneg %p137
        %p303 = pneg %p134
        %p304 = pneg %p163
        %p305 = pneg %p160
        %s306 = sand.u32 %s150, 1
        %s307 = scalar_lea.sflag [#allocation5], %s306
        %s308 = sand.u32 %s150, 1
        %s309 = scalar_lea.vmem [#allocation9], %s308
        %s310 = smul.u32 2, %s29
        %p311 = scmp.lt.s32.totalorder %s28, 1
        %s312 = scalar_select %p311, %s28, 1
        %s313 = smul.addr %s312, 4
        %s314 = scalar_lea.vmem %s3, %s313
        %p315 = scmp.eq.s32.totalorder %s29, 0
        // Predicated region
        $region49: #{tpu_custom_call.1} parent=35 // pred_check
          %p316 = pneg %p315
        $region50: #{tpu_custom_call.1} parent=35 // pred_check_branch
          %318 = sbr.rel (%p316) target = $region52
        $region51: #{tpu_custom_call.1} parent=35 // pred_region
          %319 = vst [vmem:[#allocation2] sm:$0xf] 0.0
        $region52: #{tpu_custom_call.1} parent=35 // pred_fallthru
          _
        %v320 = vld [vmem:[%s264] sm:$0xff]
        %v321 = vld [vmem:[%s255] sm:$0x1]
        %s322 = smul.u32 %s29, 256
        %v323 = vstv %s322
        %v324 = vsub.s32 %v321, %v323
        %v325 = vlaneseq
        %v326 = vshrl.u32 %v325, 7
        %v327 = vadd.s32 %v326, 8
        %v328 = vadd.s32 %v326, 16
        %v329 = vadd.s32 %v326, 24
        %v330 = vadd.s32 %v326, 32
        %v331 = vadd.s32 %v326, 40
        %v332 = vadd.s32 %v326, 48
        %v333 = vadd.s32 %v326, 56
        %v334 = vadd.s32 %v326, 64
        %v335 = vadd.s32 %v326, 72
        %v336 = vadd.s32 %v326, 80
        %v337 = vadd.s32 %v326, 88
        %v338 = vadd.s32 %v326, 96
        %v339 = vadd.s32 %v326, 104
        %v340 = vadd.s32 %v326, 112
        %v341 = vadd.s32 %v326, 120
        %v342 = vadd.s32 %v326, 128
        %v343 = vadd.s32 %v326, 136
        %v344 = vadd.s32 %v326, 144
        %v345 = vadd.s32 %v326, 152
        %v346 = vadd.s32 %v326, 160
        %v347 = vadd.s32 %v326, 168
        %v348 = vadd.s32 %v326, 176
        %v349 = vadd.s32 %v326, 184
        %v350 = vadd.s32 %v326, 192
        %v351 = vadd.s32 %v326, 200
        %v352 = vadd.s32 %v326, 208
        %v353 = vadd.s32 %v326, 216
        %v354 = vadd.s32 %v326, 224
        %v355 = vadd.s32 %v326, 232
        %v356 = vadd.s32 %v326, 240
        %v357 = vadd.s32 %v326, 248
        %v358 = vlaneseq
        %v359 = vshrl.u32 %v358, 7
        %v360 = vsub.s32 0, %v359
        %v361 = vrot.slane %v324, %v360
        %vm362 = vcmp.eq.s32.totalorder %v326, %v361
        %vm363 = vcmp.eq.s32.totalorder %v327, %v361
        %vm364 = vcmp.eq.s32.totalorder %v328, %v361
        %vm365 = vcmp.eq.s32.totalorder %v329, %v361
        %vm366 = vcmp.eq.s32.totalorder %v330, %v361
        %vm367 = vcmp.eq.s32.totalorder %v331, %v361
        %vm368 = vcmp.eq.s32.totalorder %v332, %v361
        %vm369 = vcmp.eq.s32.totalorder %v333, %v361
        %vm370 = vcmp.eq.s32.totalorder %v334, %v361
        %vm371 = vcmp.eq.s32.totalorder %v335, %v361
        %vm372 = vcmp.eq.s32.totalorder %v336, %v361
        %vm373 = vcmp.eq.s32.totalorder %v337, %v361
        %vm374 = vcmp.eq.s32.totalorder %v338, %v361
        %vm375 = vcmp.eq.s32.totalorder %v339, %v361
        %vm376 = vcmp.eq.s32.totalorder %v340, %v361
        %vm377 = vcmp.eq.s32.totalorder %v341, %v361
        %vm378 = vcmp.eq.s32.totalorder %v342, %v361
        %vm379 = vcmp.eq.s32.totalorder %v343, %v361
        %vm380 = vcmp.eq.s32.totalorder %v344, %v361
        %vm381 = vcmp.eq.s32.totalorder %v345, %v361
        %vm382 = vcmp.eq.s32.totalorder %v346, %v361
        %vm383 = vcmp.eq.s32.totalorder %v347, %v361
        %vm384 = vcmp.eq.s32.totalorder %v348, %v361
        %vm385 = vcmp.eq.s32.totalorder %v349, %v361
        %vm386 = vcmp.eq.s32.totalorder %v350, %v361
        %vm387 = vcmp.eq.s32.totalorder %v351, %v361
        %vm388 = vcmp.eq.s32.totalorder %v352, %v361
        %vm389 = vcmp.eq.s32.totalorder %v353, %v361
        %vm390 = vcmp.eq.s32.totalorder %v354, %v361
        %vm391 = vcmp.eq.s32.totalorder %v355, %v361
        %vm392 = vcmp.eq.s32.totalorder %v356, %v361
        %vm393 = vcmp.eq.s32.totalorder %v357, %v361
        %v394 = vsel %vm362, 1, 0
        %v395 = vsel %vm363, 1, 0
        %v396 = vsel %vm364, 1, 0
        %v397 = vsel %vm365, 1, 0
        %v398 = vsel %vm366, 1, 0
        %v399 = vsel %vm367, 1, 0
        %v400 = vsel %vm368, 1, 0
        %v401 = vsel %vm369, 1, 0
        %v402 = vsel %vm370, 1, 0
        %v403 = vsel %vm371, 1, 0
        %v404 = vsel %vm372, 1, 0
        %v405 = vsel %vm373, 1, 0
        %v406 = vsel %vm374, 1, 0
        %v407 = vsel %vm375, 1, 0
        %v408 = vsel %vm376, 1, 0
        %v409 = vsel %vm377, 1, 0
        %v410 = vsel %vm378, 1, 0
        %v411 = vsel %vm379, 1, 0
        %v412 = vsel %vm380, 1, 0
        %v413 = vsel %vm381, 1, 0
        %v414 = vsel %vm382, 1, 0
        %v415 = vsel %vm383, 1, 0
        %v416 = vsel %vm384, 1, 0
        %v417 = vsel %vm385, 1, 0
        %v418 = vsel %vm386, 1, 0
        %v419 = vsel %vm387, 1, 0
        %v420 = vsel %vm388, 1, 0
        %v421 = vsel %vm389, 1, 0
        %v422 = vsel %vm390, 1, 0
        %v423 = vsel %vm391, 1, 0
        %v424 = vsel %vm392, 1, 0
        %v425 = vsel %vm393, 1, 0
        %v426 = vcvt.s32.f32 %v394
        %v427 = vcvt.s32.f32 %v395
        %v428 = vcvt.s32.f32 %v396
        %v429 = vcvt.s32.f32 %v397
        %v430 = vcvt.s32.f32 %v398
        %v431 = vcvt.s32.f32 %v399
        %v432 = vcvt.s32.f32 %v400
        %v433 = vcvt.s32.f32 %v401
        %v434 = vcvt.s32.f32 %v402
        %v435 = vcvt.s32.f32 %v403
        %v436 = vcvt.s32.f32 %v404
        %v437 = vcvt.s32.f32 %v405
        %v438 = vcvt.s32.f32 %v406
        %v439 = vcvt.s32.f32 %v407
        %v440 = vcvt.s32.f32 %v408
        %v441 = vcvt.s32.f32 %v409
        %v442 = vcvt.s32.f32 %v410
        %v443 = vcvt.s32.f32 %v411
        %v444 = vcvt.s32.f32 %v412
        %v445 = vcvt.s32.f32 %v413
        %v446 = vcvt.s32.f32 %v414
        %v447 = vcvt.s32.f32 %v415
        %v448 = vcvt.s32.f32 %v416
        %v449 = vcvt.s32.f32 %v417
        %v450 = vcvt.s32.f32 %v418
        %v451 = vcvt.s32.f32 %v419
        %v452 = vcvt.s32.f32 %v420
        %v453 = vcvt.s32.f32 %v421
        %v454 = vcvt.s32.f32 %v422
        %v455 = vcvt.s32.f32 %v423
        %v456 = vcvt.s32.f32 %v424
        %v457 = vcvt.s32.f32 %v425
        %v458 = vld [vmem:[#allocation2] sm:$0xf]
        %v460 = vcombine.high %v320, %v320
        %462 = vmatprep.subr.mxu0 0.0
        %463 = vmatpush1.msra.mxu0 %v426
        %464 = vmatprep.subr.mxu0 0.0
        %465 = vmatpush1.msra.mxu0 %v427
        %466 = vmatprep.subr.mxu0 0.0
        %467 = vmatpush1.msra.mxu0 %v428
        %468 = vmatprep.subr.mxu0 0.0
        %469 = vmatpush1.msra.mxu0 %v429
        %470 = vmatprep.subr.mxu0 0.0
        %471 = vmatpush1.msra.mxu0 %v430
        %472 = vmatprep.subr.mxu0 0.0
        %473 = vmatpush1.msra.mxu0 %v431
        %474 = vmatprep.subr.mxu0 0.0
        %475 = vmatpush1.msra.mxu0 %v432
        %476 = vmatprep.subr.mxu0 0.0
        %477 = vmatpush1.msra.mxu0 %v433
        %478 = vmatprep.subr.mxu0 0.0
        %479 = vmatpush1.msra.mxu0 %v434
        %480 = vmatprep.subr.mxu0 0.0
        %481 = vmatpush1.msra.mxu0 %v435
        %482 = vmatprep.subr.mxu0 0.0
        %483 = vmatpush1.msra.mxu0 %v436
        %484 = vmatprep.subr.mxu0 0.0
        %485 = vmatpush1.msra.mxu0 %v437
        %486 = vmatprep.subr.mxu0 0.0
        %487 = vmatpush1.msra.mxu0 %v438
        %488 = vmatprep.subr.mxu0 0.0
        %489 = vmatpush1.msra.mxu0 %v439
        %490 = vmatprep.subr.mxu0 0.0
        %491 = vmatpush1.msra.mxu0 %v440
        %492 = vmatprep.subr.mxu0 0.0
        %493 = vmatpush1.msra.mxu0 %v441
        %494 = vmatprep.subr.mxu0 0.0
        %495 = vmatpush1.msra.mxu0 %v442
        %496 = vmatprep.subr.mxu0 0.0
        %497 = vmatpush1.msra.mxu0 %v443
        %498 = vmatprep.subr.mxu0 0.0
        %499 = vmatpush1.msra.mxu0 %v444
        %500 = vmatprep.subr.mxu0 0.0
        %501 = vmatpush1.msra.mxu0 %v445
        %502 = vmatprep.subr.mxu0 0.0
        %503 = vmatpush1.msra.mxu0 %v446
        %504 = vmatprep.subr.mxu0 0.0
        %505 = vmatpush1.msra.mxu0 %v447
        %506 = vmatprep.subr.mxu0 0.0
        %507 = vmatpush1.msra.mxu0 %v448
        %508 = vmatprep.subr.mxu0 0.0
        %509 = vmatpush1.msra.mxu0 %v449
        %510 = vmatprep.subr.mxu0 0.0
        %511 = vmatpush1.msra.mxu0 %v450
        %512 = vmatprep.subr.mxu0 0.0
        %513 = vmatpush1.msra.mxu0 %v451
        %514 = vmatprep.subr.mxu0 0.0
        %515 = vmatpush1.msra.mxu0 %v452
        %516 = vmatprep.subr.mxu0 0.0
        %517 = vmatpush1.msra.mxu0 %v453
        %518 = vmatprep.subr.mxu0 0.0
        %519 = vmatpush1.msra.mxu0 %v454
        %520 = vmatprep.subr.mxu0 0.0
        %521 = vmatpush1.msra.mxu0 %v455
        %522 = vmatprep.subr.mxu0 0.0
        %523 = vmatpush1.msra.mxu0 %v456
        %524 = vmatprep.subr.mxu0 0.0
        %525 = vmatpush1.msra.mxu0 %v457
        %526 = vmatprep.mubr.f32.mxu0 %v460
        %527 = vmatmul.mubr.f32.gmra.mrb[0].mxu0 %v320
        %v528 = vpop.f32.mrb[0].mxu0
        %v529 = vadd.f32 0.0, %v528
        %v530 = vpop.f32.mrb[0].mxu0
        %531 = vdwg.mxu0
        %v532 = vadd.f32 %v458, %v529
        %533 = vst [vmem:[#allocation2] sm:$0xf] %v532
        // Predicated region
        $region53: #{tpu_custom_call.1} parent=35 // pred_check
          %p534 = pneg %p315
        $region54: #{tpu_custom_call.1} parent=35 // pred_check_branch
          %536 = sbr.rel (%p534) target = $region56
        $region55: #{tpu_custom_call.1} parent=35 // pred_region
          %v537 = vld [vmem:[%s273] sm:$0xf]
          %v538 = vld [vmem:[#allocation2] sm:$0xf]
          %v539 = vmul.f32 %v538, %v537
          %v540 = vld [vmem:[%s314] sm:$0xf]
          %v541 = vmul.f32 %v540, %v537
          %v542 = vsub.f32 %v539, %v541
          %v543 = vand.u32 2147483647, %v542
          %v544 = vlaneseq
          %v545 = vand.u32 %v544, 127
          %vm546 = vcmp.eq.s32.totalorder %v545, 0
          %vm547 = vcmask 1043456
          %v548 = vsel %vm547, %v543, 0.0
          %549 = vadd.xlane.f32.xlu0 %v548
          %v550 = vpop.xlane.xlu0 %549
          %v551 = vrot.slane %v550, 4
          %v552 = vadd.f32 %v550, %v551
          %v553 = vrot.slane %v552, 2
          %v554 = vadd.f32 %v552, %v553
          %v555 = vrot.slane %v554, 1
          %v556 = vadd.f32 %v554, %v555
          %s557 = vtos %v556
          %v558 = vstv %s557
          %v559 = vsel %vm546, %v558, 0.0
          %vm560 = vcmp.eq.s32.totalorder %v545, 1
          %v561 = vsel %vm547, %v537, 0.0
          %562 = vadd.xlane.f32.xlu0 %v561
          %v563 = vpop.xlane.xlu0 %562
          %v564 = vrot.slane %v563, 4
          %v565 = vadd.f32 %v563, %v564
          %v566 = vrot.slane %v565, 2
          %v567 = vadd.f32 %v565, %v566
          %v568 = vrot.slane %v567, 1
          %v569 = vadd.f32 %v567, %v568
          %s570 = vtos %v569
          %v571 = vstv %s570
          %v572 = vsel %vm560, %v571, %v559
          %573 = vst [vmem:[%s309] sm:$0x1] %v572
        $region56: #{tpu_custom_call.1} parent=35 // pred_fallthru
          _
        %s574 = sand.u32 %s150, 1
        %s575 = scalar_lea.sflag [#allocation5], %s574
        %s576 = sand.u32 %s150, 1
        %s577 = scalar_lea.vmem [#allocation9], %s576
        // Predicated region
        $region57: #{tpu_custom_call.1} parent=35 // pred_check
          %p578 = pneg %p160
        $region58: #{tpu_custom_call.1} parent=35 // pred_check_branch
          %580 = sbr.rel (%p578) target = $region60
        $region59: #{tpu_custom_call.1} parent=35 // pred_region
          %s582 = ssub.s32 16, 16
          %583 = vsyncadd %s575, %s582
          %s584 = smul.addr %s28, 16
          %s585 = scalar_lea.hbm %s4, %s584
          %s587 = sshll.u32 %s577, 4
          %s588 = int_to_ptr.vmem [resolvable:$true] %s587
          %590 = dma.vmem_to_hbm [thread:$0]  %s588, 16, %s585, %s575
        $region60: #{tpu_custom_call.1} parent=35 // pred_fallthru
          _
      $region36: #{tpu_custom_call.1} parent=5 // pred_fallthru
        _
      %p591 = scmp.le.s32.totalorder 2, %s19
      // Predicated region
      $region61: #{tpu_custom_call.1} parent=5 // pred_check
        %p592 = pneg %p591
      $region62: #{tpu_custom_call.1} parent=5 // pred_check_branch
        %594 = sbr.rel (%p592) target = $region64
      $region63: #{tpu_custom_call.1} parent=5 // pred_region
        %s595 = ssub.s32 %s19, 2
        // Predicated region
        $region65: #{tpu_custom_call.1} parent=63 // pred_check
          %p596 = pneg %p166
        $region66: #{tpu_custom_call.1} parent=63 // pred_check_branch
          %598 = sbr.rel (%p596) target = $region68
        $region67: #{tpu_custom_call.1} parent=63 // pred_region
          %s599 = sand.u32 %s151, 1
          %s600 = scalar_lea.sflag [#allocation5], %s599
          %s601 = sand.u32 %s151, 1
          %s602 = scalar_lea.vmem [#allocation9], %s601
          %603 = dma.done %s600, 16
        $region68: #{tpu_custom_call.1} parent=63 // pred_fallthru
          _
      $region64: #{tpu_custom_call.1} parent=5 // pred_fallthru
        _
    $region6: #{tpu_custom_call.1} parent=1 // loop_footer
      %s23 = sadd.s32 1, %s19
    $region7: #{tpu_custom_call.1} parent=1 // loop_footer_branch
      %18 = sbr.rel target = $region3
    $region8: #{tpu_custom_call.1} parent=1 // loop_exit
      _
    %604 = vsyncpa [#allocation4], 1
    %s605 = scalar_lea.sflag [#allocation4], 1
    %606 = vsyncpa %s605, 1
    %607 = vsyncpa [#allocation7], 1
    %s608 = scalar_lea.sflag [#allocation7], 1
    %609 = vsyncpa %s608, 1
    %610 = vsyncpa [#allocation5], 1
    %s611 = scalar_lea.sflag [#allocation5], 1
    %612 = vsyncpa %s611, 1

</llo_original>
